<compile_context>
chip_gen: v5e
topology: v5e:2x2
jax: 0.10.0
libtpu: 0.0.40
codegen_flags: <defaults>
</compile_context>

<pallas_src>
import functools

import jax
import jax.numpy as jnp
from jax import lax
from jax.experimental import pallas as pl
from jax.experimental.pallas import tpu as pltpu


def _round_up(x, m):
    return ((x + m - 1) // m) * m


def _fy_loss_kernel(theta_ref, y_ref, out_ref, m_sc, s_sc, acc_sc, *,
                    n_rows, n_cols, tile_n, tile_c, dense):
    """Grid: (row tiles ["parallel"], class tiles ["arbitrary" reduction])."""
    i = pl.program_id(0)
    k = pl.program_id(1)
    nk = pl.num_programs(1)

    @pl.when(k == 0)
    def _():
        m_sc[...] = jnp.full((tile_n, 1), -jnp.inf, jnp.float32)
        s_sc[...] = jnp.zeros((tile_n, 1), jnp.float32)
        acc_sc[...] = jnp.zeros((tile_n, 1), jnp.float32)

    theta = theta_ref[...].astype(jnp.float32)                   # (tile_n, tile_c)
    col = k * tile_c + lax.broadcasted_iota(jnp.int32, (tile_n, tile_c), 1)
    col_ok = col < n_cols                                        # ragged-C mask

    # ---- online logsumexp over the class axis (NaN-safe via selects) -------
    theta_m = jnp.where(col_ok, theta, -jnp.inf)
    m_prev = m_sc[...]
    m_new = jnp.maximum(m_prev, jnp.max(theta_m, axis=1, keepdims=True))
    s_sc[...] = (s_sc[...] * jnp.exp(m_prev - m_new)
                 + jnp.sum(jnp.exp(theta_m - m_new), axis=1, keepdims=True))
    m_sc[...] = m_new

    # ---- target-dependent term ----------------------------------------------
    if dense:
        y = y_ref[...].astype(jnp.float32)                       # (tile_n, tile_c)
        safe_log = jnp.where(y > 0.0, jnp.log(jnp.maximum(y, 1e-30)), 0.0)
        # Fused:  Omega(y) - <y, theta>  ==  sum(y * (log y - theta))
        term = jnp.where(col_ok, y * (safe_log - theta), 0.0)
        acc_sc[...] += jnp.sum(term, axis=1, keepdims=True)
    else:
        labels = y_ref[...]                                      # (tile_n, 1) int32
        # In-kernel "one-hot" gather: -theta[row, label]; no (N, C) one-hot in HBM.
        term = jnp.where(col == labels, theta, 0.0)
        acc_sc[...] -= jnp.sum(term, axis=1, keepdims=True)

    # ---- finalize on the last class tile -------------------------------------
    @pl.when(k == nk - 1)
    def _():
        ret = m_sc[...] + jnp.log(s_sc[...]) + acc_sc[...]       # (tile_n, 1)
        row = i * tile_n + lax.broadcasted_iota(jnp.int32, (tile_n, 1), 0)
        ret = jnp.where(row < n_rows, ret, 0.0)                  # ragged-row mask
        out_ref[...] = jnp.sum(ret, keepdims=True)               # (1, 1) partial


def _select_tiles(N, C, theta_itemsize, dense, tile_n=None, tile_c=None):
    """Generation- and dtype-aware tile / VMEM-limit selection."""
    try:
        vmem_cap = int(getattr(pltpu.get_tpu_info(), "vmem_capacity_bytes",
                               64 * 1024 * 1024))
    except Exception:
        vmem_cap = 64 * 1024 * 1024
    small_vmem = vmem_cap <= 64 * 1024 * 1024       # v7x-class (64 MiB per TC)

    if tile_c is None:
        # Keep the whole class dim in one lane-dense block when reasonable,
        # otherwise tile C in multiples of 128 and reduce online.
        max_c = 2048 if small_vmem else 4096
        tile_c = C if C <= max_c else max_c
    else:
        tile_c = min(tile_c, C)
    assert tile_c == C or tile_c % 128 == 0, "tile_c must be C or a multiple of 128"

    if tile_n is None:
        # Per-step theta-DMA budget (dtype-aware: bf16 gets 2x the elements for
        # the same bytes) capped by an f32-temp element budget that keeps the
        # double-buffered inputs + ~4-6 live f32 temps inside the VMEM limit.
        if small_vmem:
            dma_budget = (4 if dense else 6) * 1024 * 1024
            temp_elems_cap = (768 if dense else 1280) * 1024
        else:
            dma_budget = (8 if dense else 12) * 1024 * 1024
            temp_elems_cap = (2048 if dense else 3072) * 1024
        tile_elems = min(dma_budget // max(theta_itemsize, 1), temp_elems_cap)
        tile_n = max(8, (tile_elems // tile_c) // 8 * 8)
    tile_n = max(8, (tile_n // 8) * 8)
    tile_n = min(tile_n, _round_up(N, 8))
    if small_vmem and N > 8:
        # v7x: 2 TensorCores share the "parallel" row axis -> keep >= 2 row tiles.
        tile_n = min(tile_n, _round_up(pl.cdiv(N, 2), 8))

    vmem_limit = (40 if small_vmem else 96) * 1024 * 1024
    return tile_n, tile_c, vmem_limit


def fy_loss(theta, y_true, weights="average", *, tile_n=None, tile_c=None):
    """Logistic Fenchel-Young loss forward pass (scalar)."""
    theta = jnp.asarray(theta)
    if theta.ndim != 2:
        raise ValueError("theta must be 2-D (batch, classes).")
    N, C = theta.shape
    y_true = jnp.asarray(y_true)

    if y_true.ndim == 1:
        if not jnp.issubdtype(y_true.dtype, jnp.integer):
            raise ValueError("y_true should contain integers.")
        dense = False
    elif y_true.ndim == 2:
        dense = True
    else:
        raise ValueError("Invalid shape for y_true.")

    tile_n, tile_c, vmem_limit = _select_tiles(
        N, C, theta.dtype.itemsize, dense, tile_n, tile_c)
    num_row_tiles = pl.cdiv(N, tile_n)
    num_col_tiles = pl.cdiv(C, tile_c)

    kernel = functools.partial(_fy_loss_kernel, n_rows=N, n_cols=C,
                               tile_n=tile_n, tile_c=tile_c, dense=dense)

    theta_spec = pl.BlockSpec((tile_n, tile_c), lambda i, k: (i, k))
    if dense:
        y_arg = y_true
        y_spec = pl.BlockSpec((tile_n, tile_c), lambda i, k: (i, k))
        flops = 8 * N * C
        transcendentals = 2 * N * C              # exp + log
        y_bytes = y_true.size * y_true.dtype.itemsize
    else:
        y_arg = y_true.astype(jnp.int32).reshape(N, 1)
        y_spec = pl.BlockSpec((tile_n, 1), lambda i, k: (i, 0))
        flops = 5 * N * C
        transcendentals = N * C                  # exp only
        y_bytes = N * 4

    partials = pl.pallas_call(
        kernel,
        out_shape=jax.ShapeDtypeStruct((num_row_tiles, 1), jnp.float32),
        grid=(num_row_tiles, num_col_tiles),
        in_specs=[theta_spec, y_spec],
        out_specs=pl.BlockSpec((1, 1), lambda i, k: (i, 0)),
        scratch_shapes=[pltpu.VMEM((tile_n, 1), jnp.float32)] * 3,
        compiler_params=pltpu.CompilerParams(
            dimension_semantics=("parallel", "arbitrary"),
            vmem_limit_bytes=vmem_limit,
        ),
        cost_estimate=pl.CostEstimate(
            flops=int(flops),
            transcendentals=int(transcendentals),
            bytes_accessed=int(theta.size * theta.dtype.itemsize + y_bytes
                               + num_row_tiles * 4),
        ),
    )(theta, y_arg)

    total = jnp.sum(partials)
    if weights == "average":
        return total / jnp.float32(N)
    return total


def _fy_loss_ref(theta, y_true, weights="average"):
    """Pure-JAX reference mirroring the PyTorch forward (logistic FY loss)."""
    theta = theta.astype(jnp.float32)
    p = jax.nn.softmax(theta, axis=1)
    logp = jax.nn.log_softmax(theta, axis=1)
    ret = jnp.sum(theta * p, axis=1) - jnp.sum(p * logp, axis=1)
    if y_true.ndim == 2:
        y = y_true.astype(jnp.float32)
        safe_log = jnp.where(y > 0, jnp.log(jnp.maximum(y, 1e-30)), 0.0)
        ret = ret + jnp.sum(y * safe_log, axis=1)
        ret = ret - jnp.sum(y * theta, axis=1)
    else:
        ret = ret - theta[jnp.arange(theta.shape[0]), y_true]
    return jnp.mean(ret) if weights == "average" else jnp.sum(ret)


if __name__ == "__main__":
    key = jax.random.PRNGKey(0)
    k1, k2, k3, k4, k5 = jax.random.split(key, 5)

    # Case 1: small single-tile, integer labels, averaged.
    N, C = 8, 32
    theta = jax.random.normal(k1, (N, C), dtype=jnp.float32)
    y_idx = jax.random.randint(k2, (N,), 0, C, dtype=jnp.int32)
    out1 = jax.block_until_ready(fy_loss(theta, y_idx, weights="average"))
    ref1 = _fy_loss_ref(theta, y_idx, weights="average")

    # Case 2: small single-tile, probability (2-D) targets.
    y_prob = jax.nn.softmax(jax.random.normal(k3, (N, C), dtype=jnp.float32), axis=1)
    out2 = jax.block_until_ready(fy_loss(theta, y_prob, weights="average"))
    ref2 = _fy_loss_ref(theta, y_prob, weights="average")

    # Case 3: ragged rows + ragged class tiles, int labels, no HBM padding,
    #         multiple row tiles (exercises the (1,1) partial-output path) and
    #         the online logsumexp across 3 class tiles (last tile 64 valid cols).
    N3, C3 = 21, 320
    theta3 = jax.random.normal(k4, (N3, C3), dtype=jnp.float32)
    y_idx3 = jax.random.randint(k2, (N3,), 0, C3, dtype=jnp.int32)
    out3 = jax.block_until_ready(
        fy_loss(theta3, y_idx3, weights="sum", tile_n=8, tile_c=128))
    ref3 = _fy_loss_ref(theta3, y_idx3, weights="sum")

    # Case 4: same ragged shape with dense probability targets (fused y-term).
    y_prob3 = jax.nn.softmax(jax.random.normal(k5, (N3, C3), dtype=jnp.float32),
                             axis=1)
    out4 = jax.block_until_ready(
        fy_loss(theta3, y_prob3, weights="average", tile_n=8, tile_c=128))
    ref4 = _fy_loss_ref(theta3, y_prob3, weights="average")

    assert jnp.allclose(out1, ref1, atol=1e-4, rtol=1e-4), (out1, ref1)
    assert jnp.allclose(out2, ref2, atol=1e-4, rtol=1e-4), (out2, ref2)
    assert jnp.allclose(out3, ref3, atol=1e-3, rtol=1e-4), (out3, ref3)
    assert jnp.allclose(out4, ref4, atol=1e-4, rtol=1e-4), (out4, ref4)
    print("KERNEL_OK")
</pallas_src>

<mosaic_0001>
module attributes {stable_mosaic.version = 11 : i64} {
  func.func @_fy_loss_kernel(%arg0: i32, %arg1: i32, %arg2: memref<8x32xf32, #tpu.memory_space<vmem>>, %arg3: memref<8x1xi32, #tpu.memory_space<vmem>>, %arg4: memref<1x1xf32, #tpu.memory_space<vmem>>, %arg5: memref<8x1xf32, #tpu.memory_space<vmem>>, %arg6: memref<8x1xf32, #tpu.memory_space<vmem>>, %arg7: memref<8x1xf32, #tpu.memory_space<vmem>>) attributes {dimension_semantics = [#tpu.dimension_semantics<parallel>, #tpu.dimension_semantics<arbitrary>], iteration_bounds = array<i64: 1, 1>, scalar_prefetch = 0 : i64, scratch_operands = 3 : i64, tpu.core_type = #tpu.core_type<tc>, window_params = [{transform_indices = @transform_0, window_bounds = array<i64: 8, 32>}, {transform_indices = @transform_1, window_bounds = array<i64: 8, 1>}, {transform_indices = @transform_2, window_bounds = array<i64: 1, 1>}]} {
    %c0_i32 = arith.constant 0 : i32
    %0 = arith.cmpi eq, %arg1, %c0_i32 : i32
    %1 = arith.extui %0 : i1 to i32
    %c0_i32_0 = arith.constant 0 : i32
    %2 = arith.cmpi ne, %1, %c0_i32_0 : i32
    scf.if %2 {
      %cst_23 = arith.constant 0xFF800000 : f32
      %41 = vector.broadcast %cst_23 : f32 to vector<8x1xf32>
      %c0_24 = arith.constant 0 : index
      %c0_25 = arith.constant 0 : index
      %42 = vector.load %arg5[%c0_24, %c0_25] : memref<8x1xf32, #tpu.memory_space<vmem>>, vector<8x1xf32>
      tpu.vector_store %arg5[%c0_24, %c0_25], %41 {strides = array<i32>} : memref<8x1xf32, #tpu.memory_space<vmem>>, vector<8x1xf32>,
      %cst_26 = arith.constant 0.000000e+00 : f32
      %43 = vector.broadcast %cst_26 : f32 to vector<8x1xf32>
      %c0_27 = arith.constant 0 : index
      %c0_28 = arith.constant 0 : index
      %44 = vector.load %arg6[%c0_27, %c0_28] : memref<8x1xf32, #tpu.memory_space<vmem>>, vector<8x1xf32>
      tpu.vector_store %arg6[%c0_27, %c0_28], %43 {strides = array<i32>} : memref<8x1xf32, #tpu.memory_space<vmem>>, vector<8x1xf32>,
      %cst_29 = arith.constant 0.000000e+00 : f32
      %45 = vector.broadcast %cst_29 : f32 to vector<8x1xf32>
      %c0_30 = arith.constant 0 : index
      %c0_31 = arith.constant 0 : index
      %46 = vector.load %arg7[%c0_30, %c0_31] : memref<8x1xf32, #tpu.memory_space<vmem>>, vector<8x1xf32>
      tpu.vector_store %arg7[%c0_30, %c0_31], %45 {strides = array<i32>} : memref<8x1xf32, #tpu.memory_space<vmem>>, vector<8x1xf32>,
    } else {
    }
    %c0 = arith.constant 0 : index
    %c0_1 = arith.constant 0 : index
    %3 = vector.load %arg2[%c0, %c0_1] : memref<8x32xf32, #tpu.memory_space<vmem>>, vector<8x32xf32>
    %c32_i32 = arith.constant 32 : i32
    %4 = arith.muli %arg1, %c32_i32 : i32
    %5 = tpu.iota {dimensions = array<i32: 1>} : vector<8x32xi32>
    %6 = vector.broadcast %4 : i32 to vector<8x32xi32>
    %7 = arith.addi %6, %5 : vector<8x32xi32>
    %c32_i32_2 = arith.constant 32 : i32
    %8 = vector.broadcast %c32_i32_2 : i32 to vector<8x32xi32>
    %9 = arith.cmpi slt, %7, %8 : vector<8x32xi32>
    %cst = arith.constant 0xFF800000 : f32
    %10 = vector.broadcast %cst : f32 to vector<8x32xf32>
    %11 = arith.select %9, %3, %10 : vector<8x32xi1>, vector<8x32xf32>
    %c0_3 = arith.constant 0 : index
    %c0_4 = arith.constant 0 : index
    %12 = vector.load %arg5[%c0_3, %c0_4] : memref<8x1xf32, #tpu.memory_space<vmem>>, vector<8x1xf32>
    %cst_5 = arith.constant dense<0xFF800000> : vector<8xf32>
    %13 = vector.multi_reduction <maximumf>, %11, %cst_5 [1] : vector<8x32xf32> to vector<8xf32>
    %14 = vector.shape_cast %13 : vector<8xf32> to vector<8x1xf32>
    %15 = arith.maximumf %12, %14 : vector<8x1xf32>
    %c0_6 = arith.constant 0 : index
    %c0_7 = arith.constant 0 : index
    %16 = vector.load %arg6[%c0_6, %c0_7] : memref<8x1xf32, #tpu.memory_space<vmem>>, vector<8x1xf32>
    %17 = arith.subf %12, %15 : vector<8x1xf32>
    %18 = math.exp %17 : vector<8x1xf32>
    %19 = arith.mulf %16, %18 : vector<8x1xf32>
    %20 = vector.broadcast %15 : vector<8x1xf32> to vector<8x32xf32>
    %21 = arith.subf %11, %20 : vector<8x32xf32>
    %22 = math.exp %21 : vector<8x32xf32>
    %cst_8 = arith.constant dense<0.000000e+00> : vector<8xf32>
    %23 = vector.multi_reduction <add>, %22, %cst_8 [1] : vector<8x32xf32> to vector<8xf32>
    %24 = vector.shape_cast %23 : vector<8xf32> to vector<8x1xf32>
    %25 = arith.addf %19, %24 : vector<8x1xf32>
    %c0_9 = arith.constant 0 : index
    %c0_10 = arith.constant 0 : index
    %26 = vector.load %arg6[%c0_9, %c0_10] : memref<8x1xf32, #tpu.memory_space<vmem>>, vector<8x1xf32>
    tpu.vector_store %arg6[%c0_9, %c0_10], %25 {strides = array<i32>} : memref<8x1xf32, #tpu.memory_space<vmem>>, vector<8x1xf32>,
    %c0_11 = arith.constant 0 : index
    %c0_12 = arith.constant 0 : index
    %27 = vector.load %arg5[%c0_11, %c0_12] : memref<8x1xf32, #tpu.memory_space<vmem>>, vector<8x1xf32>
    tpu.vector_store %arg5[%c0_11, %c0_12], %15 {strides = array<i32>} : memref<8x1xf32, #tpu.memory_space<vmem>>, vector<8x1xf32>,
    %c0_13 = arith.constant 0 : index
    %c0_14 = arith.constant 0 : index
    %28 = vector.load %arg3[%c0_13, %c0_14] : memref<8x1xi32, #tpu.memory_space<vmem>>, vector<8x1xi32>
    %29 = vector.broadcast %28 : vector<8x1xi32> to vector<8x32xi32>
    %30 = arith.cmpi eq, %7, %29 : vector<8x32xi32>
    %cst_15 = arith.constant 0.000000e+00 : f32
    %31 = vector.broadcast %cst_15 : f32 to vector<8x32xf32>
    %32 = arith.select %30, %3, %31 : vector<8x32xi1>, vector<8x32xf32>
    %c0_16 = arith.constant 0 : index
    %c0_17 = arith.constant 0 : index
    %33 = vector.load %arg7[%c0_16, %c0_17] : memref<8x1xf32, #tpu.memory_space<vmem>>, vector<8x1xf32>
    %cst_18 = arith.constant dense<0.000000e+00> : vector<8xf32>
    %34 = vector.multi_reduction <add>, %32, %cst_18 [1] : vector<8x32xf32> to vector<8xf32>
    %35 = vector.shape_cast %34 : vector<8xf32> to vector<8x1xf32>
    %36 = arith.subf %33, %35 : vector<8x1xf32>
    %c0_19 = arith.constant 0 : index
    %c0_20 = arith.constant 0 : index
    %37 = vector.load %arg7[%c0_19, %c0_20] : memref<8x1xf32, #tpu.memory_space<vmem>>, vector<8x1xf32>
    tpu.vector_store %arg7[%c0_19, %c0_20], %36 {strides = array<i32>} : memref<8x1xf32, #tpu.memory_space<vmem>>, vector<8x1xf32>,
    %c0_i32_21 = arith.constant 0 : i32
    %38 = arith.cmpi eq, %arg1, %c0_i32_21 : i32
    %39 = arith.extui %38 : i1 to i32
    %c0_i32_22 = arith.constant 0 : i32
    %40 = arith.cmpi ne, %39, %c0_i32_22 : i32
    scf.if %40 {
      %c0_23 = arith.constant 0 : index
      %c0_24 = arith.constant 0 : index
      %41 = vector.load %arg5[%c0_23, %c0_24] : memref<8x1xf32, #tpu.memory_space<vmem>>, vector<8x1xf32>
      %c0_25 = arith.constant 0 : index
      %c0_26 = arith.constant 0 : index
      %42 = vector.load %arg6[%c0_25, %c0_26] : memref<8x1xf32, #tpu.memory_space<vmem>>, vector<8x1xf32>
      %43 = math.log %42 : vector<8x1xf32>
      %44 = arith.addf %41, %43 : vector<8x1xf32>
      %c0_27 = arith.constant 0 : index
      %c0_28 = arith.constant 0 : index
      %45 = vector.load %arg7[%c0_27, %c0_28] : memref<8x1xf32, #tpu.memory_space<vmem>>, vector<8x1xf32>
      %46 = arith.addf %44, %45 : vector<8x1xf32>
      %c8_i32 = arith.constant 8 : i32
      %47 = arith.muli %arg0, %c8_i32 : i32
      %48 = tpu.iota {dimensions = array<i32: 0>} : vector<8x1xi32>
      %49 = vector.broadcast %47 : i32 to vector<8x1xi32>
      %50 = arith.addi %49, %48 : vector<8x1xi32>
      %c8_i32_29 = arith.constant 8 : i32
      %51 = vector.broadcast %c8_i32_29 : i32 to vector<8x1xi32>
      %52 = arith.cmpi slt, %50, %51 : vector<8x1xi32>
      %cst_30 = arith.constant 0.000000e+00 : f32
      %53 = vector.broadcast %cst_30 : f32 to vector<8x1xf32>
      %54 = arith.select %52, %46, %53 : vector<8x1xi1>, vector<8x1xf32>
      %55 = vector.shape_cast %54 : vector<8x1xf32> to vector<1x8x1xf32>
      %cst_31 = arith.constant dense<0.000000e+00> : vector<1xf32>
      %56 = vector.multi_reduction <add>, %55, %cst_31 [1, 2] : vector<1x8x1xf32> to vector<1xf32>
      %57 = vector.shape_cast %56 : vector<1xf32> to vector<1x1x1xf32>
      %58 = vector.extract %57[0, 0, 0] : f32 from vector<1x1x1xf32>
      %59 = vector.broadcast %58 : f32 to vector<1x1xf32>
      %c0_32 = arith.constant 0 : index
      %c0_33 = arith.constant 0 : index
      %60 = vector.load %arg4[%c0_32, %c0_33] : memref<1x1xf32, #tpu.memory_space<vmem>>, vector<1x1xf32>
      tpu.vector_store %arg4[%c0_32, %c0_33], %59 {strides = array<i32>} : memref<1x1xf32, #tpu.memory_space<vmem>>, vector<1x1xf32>,
    } else {
    }
    return
  }
  func.func @transform_0(%arg0: i32, %arg1: i32) -> (i32, i32) {
    %c0_i32 = arith.constant 0 : i32
    return %arg0, %arg1 : i32, i32
  }
  func.func @transform_1(%arg0: i32, %arg1: i32) -> (i32, i32) {
    %c0_i32 = arith.constant 0 : i32
    %c0_i32_0 = arith.constant 0 : i32
    return %arg0, %c0_i32 : i32, i32
  }
  func.func @transform_2(%arg0: i32, %arg1: i32) -> (i32, i32) {
    %c0_i32 = arith.constant 0 : i32
    %c0_i32_0 = arith.constant 0 : i32
    return %arg0, %c0_i32 : i32, i32
  }
}

</mosaic_0001>

<llo_original>
// kernel: tpu_custom_call.1
$region0: #{tpu_custom_call.1}
  #allocation0 [shape = 'u32[]', space=smem, size = 0x4, offset = 0x4, fixed_abs, tag = 'smem constant byte address 0x4 - core index']
  #allocation1 [shape = 'u32[72,128]{1,0:T(1,128)}', space=vmem, size = 0x9000, scoped, tag = 'internal scratch']
  #allocation2 [shape = 'f32[8,1]{1,0:T(8,128)}', space=vmem, size = 0x1000, scoped, tag = 'scratch operand']
  #allocation3 [shape = 'f32[8,1]{1,0:T(8,128)}', space=vmem, size = 0x1000, scoped, tag = 'scratch operand']
  #allocation4 [shape = 'f32[8,1]{1,0:T(8,128)}', space=vmem, size = 0x1000, scoped, tag = 'scratch operand']
  %s0 = inlined_call_operand.vmem [shape: f32[8,32], index: 0, kind: input, shape index: {}]
  %s1 = inlined_call_operand.vmem [shape: s32[8,1], index: 1, kind: input, shape index: {}]
  %s2 = inlined_call_operand.hbm [shape: f32[1,1], index: 2, kind: output, shape index: {}]
  %s3 = sld [smem:[#allocation0]]
  $region26: #{tpu_custom_call.1} parent=0
    _
  %s5 = ssub.s32 1, %s3
  %s6 = scalar_select 0, %s5, %s3
  $region1: #{tpu_custom_call.1} parent=0
    #allocation5 [shape = 'u8[512]{0}', space=vmem, size = 0x400, scoped, tag = 'output window, operand 0, single buffered']
    #allocation6 [shape = 's32[1]{0}', space=sflag, size = 0x4, scoped, tag = 'scoped memory for tpu_custom_call.1']
    %7 = vsyncpa [#allocation6], 0
    // Predicated region
    $region2: #{tpu_custom_call.1} parent=1 // pred_check
      _
    $region3: #{tpu_custom_call.1} parent=1 // pred_check_branch
      %9 = sbr.rel (0) target = $region5
    $region4: #{tpu_custom_call.1} parent=1 // pred_region
      _
    $region5: #{tpu_custom_call.1} parent=1 // pred_fallthru
      _
    // Predicated region
    $region6: #{tpu_custom_call.1} parent=1 // pred_check
      _
    $region7: #{tpu_custom_call.1} parent=1 // pred_check_branch
      %11 = sbr.rel (0) target = $region9
    $region8: #{tpu_custom_call.1} parent=1 // pred_region
      _
    $region9: #{tpu_custom_call.1} parent=1 // pred_fallthru
      _
    %p12 = scmp.eq.s32.totalorder 0, 0
    // Predicated region
    $region10: #{tpu_custom_call.1} parent=1 // pred_check
      %p13 = pneg %p12
    $region11: #{tpu_custom_call.1} parent=1 // pred_check_branch
      %15 = sbr.rel (%p13) target = $region13
    $region12: #{tpu_custom_call.1} parent=1 // pred_region
      %vm16 = vcmask 7168
      %17 = vst.msk [vmem:[#allocation2] sm:$0xff] %vm16, -inf
      %18 = vst.msk [vmem:[#allocation3] sm:$0xff] %vm16, 0.0
      %19 = vst.msk [vmem:[#allocation4] sm:$0xff] %vm16, 0.0
    $region13: #{tpu_custom_call.1} parent=1 // pred_fallthru
      _
    %v20 = vld [vmem:[%s0] sm:$0xff]
    %s21 = smul.u32 0, 32
    %v22 = vlaneseq
    %v23 = vand.u32 %v22, 127
    %v24 = vstv %s21
    %v25 = vadd.s32 %v24, %v23
    %vm26 = vcmp.lt.s32.totalorder %v25, 32
    %v27 = vsel %vm26, %v20, -inf
    %v28 = vld [vmem:[#allocation2] sm:$0xff]
    %vm29 = vcmask 261120
    %v30 = vsel %vm29, %v27, -inf
    %31 = vmax.xlane.f32.xlu0 %v30
    %v32 = vpop.xlane.xlu0 %31
    %v33 = vmax.f32 %v28, %v32
    %v34 = vld [vmem:[#allocation3] sm:$0xff]
    %v35 = vsub.f32 %v28, %v33
    %v36 = vmul.f32 %v35, 1.442695
    %v37 = vpow.pop %v36
    %v38 = vmul.f32 %v34, %v37
    %40 = vset.pattern.permute.xlu0 0
    %41 = vperm.xlu0 %40, %v33
    %v42 = vpop.permute.xlu0 %41
    %v44 = vsub.f32 %v27, %v42
    %v45 = vmul.f32 %v44, 1.442695
    %v46 = vpow.pop %v45
    %v47 = vsel %vm29, %v46, 0.0
    %48 = vadd.xlane.f32.xlu0 %v47
    %v49 = vpop.xlane.xlu0 %48
    %v50 = vadd.f32 %v38, %v49
    %vm51 = vcmask 7168
    %52 = vst.msk [vmem:[#allocation3] sm:$0xff] %vm51, %v50
    %53 = vst.msk [vmem:[#allocation2] sm:$0xff] %vm51, %v33
    %v54 = vld [vmem:[%s1] sm:$0xff]
    %55 = vset.pattern.permute.xlu0 0
    %56 = vperm.xlu0 %55, %v54
    %v57 = vpop.permute.xlu0 %56
    %vm58 = vcmp.eq.s32.totalorder %v25, %v57
    %v59 = vsel %vm58, %v20, 0.0
    %v60 = vld [vmem:[#allocation4] sm:$0xff]
    %v61 = vsel %vm29, %v59, 0.0
    %62 = vadd.xlane.f32.xlu0 %v61
    %v63 = vpop.xlane.xlu0 %62
    %v64 = vsub.f32 %v60, %v63
    %65 = vst.msk [vmem:[#allocation4] sm:$0xff] %vm51, %v64
    // Predicated region
    $region14: #{tpu_custom_call.1} parent=1 // pred_check
      %p66 = pneg %p12
    $region15: #{tpu_custom_call.1} parent=1 // pred_check_branch
      %68 = sbr.rel (%p66) target = $region17
    $region16: #{tpu_custom_call.1} parent=1 // pred_region
      %v69 = vld [vmem:[#allocation2] sm:$0xff]
      %v70 = vld [vmem:[#allocation3] sm:$0xff]
      %v71 = vlog2.pop %v70
      %v72 = vmul.f32 %v71, 0.6931472
      %v73 = vadd.f32 %v69, %v72
      %v74 = vld [vmem:[#allocation4] sm:$0xff]
      %v75 = vadd.f32 %v73, %v74
      %s76 = smul.u32 0, 8
      %v77 = vlaneseq
      %v78 = vshrl.u32 %v77, 7
      %v79 = vstv %s76
      %v80 = vadd.s32 %v79, %v78
      %vm81 = vcmp.lt.s32.totalorder %v80, 8
      %v82 = vsel %vm81, %v75, 0.0
      %v83 = vsel %vm51, %v82, 0.0
      %84 = vadd.xlane.f32.xlu0 %v83
      %v85 = vpop.xlane.xlu0 %84
      %v86 = vrot.slane %v85, 4
      %v87 = vadd.f32 %v85, %v86
      %v88 = vrot.slane %v87, 2
      %v89 = vadd.f32 %v87, %v88
      %v90 = vrot.slane %v89, 1
      %v91 = vadd.f32 %v89, %v90
      %s92 = vtos %v91
      %v93 = vstv %s92
      %vm94 = vcmask 0
      %95 = vst.msk [vmem:[#allocation5] sm:$0x1] %vm94, %v93
    $region17: #{tpu_custom_call.1} parent=1 // pred_fallthru
      _
    // Predicated region
    $region18: #{tpu_custom_call.1} parent=1 // pred_check
      _
    $region19: #{tpu_custom_call.1} parent=1 // pred_check_branch
      %97 = sbr.rel (0) target = $region21
    $region20: #{tpu_custom_call.1} parent=1 // pred_region
      %99 = vsyncadd [#allocation6], 0
      %s101 = sshll.u32 [#allocation5], 4
      %s102 = int_to_ptr.vmem [resolvable:$true] %s101
      %s103 = sshll.u32 %s2, 4
      %s104 = int_to_ptr.hbm [resolvable:$true] %s103
      %106 = dma.vmem_to_hbm [thread:$0]  %s102, 16, %s104, [#allocation6]
    $region21: #{tpu_custom_call.1} parent=1 // pred_fallthru
      _
    // Predicated region
    $region22: #{tpu_custom_call.1} parent=1 // pred_check
      _
    $region23: #{tpu_custom_call.1} parent=1 // pred_check_branch
      %108 = sbr.rel (0) target = $region25
    $region24: #{tpu_custom_call.1} parent=1 // pred_region
      %110 = dma.done [#allocation6], 16
    $region25: #{tpu_custom_call.1} parent=1 // pred_fallthru
      _
    %111 = vsyncpa [#allocation6], 1

</llo_original>
